<compile_context>
chip_gen: v6e
topology: v6e:2x2x1
jax: 0.10.0
libtpu: 0.0.40
codegen_flags: <defaults>
</compile_context>

<pallas_src>
import jax
import jax.numpy as jnp
from jax.experimental import pallas as pl
from jax.experimental.pallas import tpu as pltpu


def _round_up(a, b):
    return (a + b - 1) // b * b


def _make_kernel(n_rows, n_cols, block_rows, block_cols, n_class_tiles, g_rows):
    mask_cols = n_class_tiles * block_cols > n_cols
    mask_rows = g_rows * block_rows > n_rows

    def kernel(x_ref, t_ref, out_ref, m_sc, l_sc, st_sc, stx_sc):
        i = pl.program_id(0)
        j = pl.program_id(1)

        @pl.when(j == 0)
        def _():
            m_sc[...] = jnp.full_like(m_sc, -jnp.inf)
            l_sc[...] = jnp.zeros_like(l_sc)
            st_sc[...] = jnp.zeros_like(st_sc)
            stx_sc[...] = jnp.zeros_like(stx_sc)

        # Upcast in VMEM (required for stable math; v5e has no bf16 VPU/EUP).
        x = x_ref[...].astype(jnp.float32)
        t = t_ref[...].astype(jnp.float32)

        if mask_cols:
            # Trailing partial class tile reads unspecified data: discard via
            # select, never via arithmetic.
            col = j * block_cols + jax.lax.broadcasted_iota(
                jnp.int32, (block_rows, block_cols), 1)
            col_ok = col < n_cols
            x_lse = jnp.where(col_ok, x, -jnp.inf)
            x = jnp.where(col_ok, x, 0.0)
            t = jnp.where(col_ok, t, 0.0)
        else:
            x_lse = x

        # Online log-sum-exp along the class axis.
        m_prev = m_sc[...]
        m_new = jnp.maximum(m_prev, jnp.max(x_lse, axis=-1, keepdims=True))
        alpha = jnp.exp(m_prev - m_new)
        l_sc[...] = alpha * l_sc[...] + jnp.sum(
            jnp.exp(x_lse - m_new), axis=-1, keepdims=True)
        m_sc[...] = m_new

        # Partial t-weighted sums: loss_row = (m + log l) * sum(t) - sum(t * x).
        st_sc[...] = st_sc[...] + jnp.sum(t, axis=-1, keepdims=True)
        stx_sc[...] = stx_sc[...] + jnp.sum(t * x, axis=-1, keepdims=True)

        @pl.when(j == n_class_tiles - 1)
        def _():
            lse = m_sc[...] + jnp.log(l_sc[...])
            loss_rows = lse * st_sc[...] - stx_sc[...]        # (block_rows, 1)
            if mask_rows:
                # No input padding: rows past the true batch are masked here.
                row = i * block_rows + jax.lax.broadcasted_iota(
                    jnp.int32, (block_rows, 1), 0)
                loss_rows = jnp.where(row < n_rows, loss_rows, 0.0)
            # Single partial sum per row tile (tiny output, no per-row stores).
            out_ref[...] = jnp.sum(loss_rows).reshape(1, 1, 1)

    return kernel


def soft_target_cross_entropy(x, target, *, block_bytes=2 << 20):
    """Mean soft-target cross-entropy: sum_c(-target * log_softmax(x, -1)).mean().

    x / target may be f32 or bf16 (bf16 halves HBM traffic; the kernel is pure
    HBM-roofline and upcasts to f32 inside VMEM). Returns a scalar in x.dtype.
    """
    assert x.shape == target.shape
    c = x.shape[-1]
    x2 = x.reshape(-1, c)
    t2 = target.reshape(-1, c)
    n = x2.shape[0]

    # Tile sizing against the f32 *compute* footprint (inputs are upcast in
    # VMEM, so narrow input dtypes don't shrink the live working set).
    elems_budget = max(block_bytes // 4, 8 * 128)
    if c * 8 <= elems_budget:
        # Whole class axis in one tile.
        block_cols = c
        n_class_tiles = 1
        rows_budget = max(8, (elems_budget // c) // 8 * 8)
    else:
        # Very large C: tile the class axis, online-LSE accumulation in-kernel.
        block_cols = min(max(128, (elems_budget // 8) // 128 * 128),
                         _round_up(c, 128))
        n_class_tiles = pl.cdiv(c, block_cols)
        rows_budget = 8

    # Cap block_rows so the "parallel" row axis has >= 2 steps whenever n allows
    # it (v7x can then shard across both TensorCores; costs ~nothing elsewhere).
    block_rows = int(min(rows_budget, _round_up(pl.cdiv(n, 2), 8)))
    g_rows = pl.cdiv(n, block_rows)     # no jnp.pad: trailing rows masked in-kernel

    kernel = _make_kernel(n, c, block_rows, block_cols, n_class_tiles, g_rows)

    partial_sums = pl.pallas_call(
        kernel,
        out_shape=jax.ShapeDtypeStruct((g_rows, 1, 1), jnp.float32),
        grid_spec=pltpu.PrefetchScalarGridSpec(
            num_scalar_prefetch=0,
            grid=(g_rows, n_class_tiles),
            in_specs=[
                pl.BlockSpec((block_rows, block_cols), lambda i, j: (i, j)),
                pl.BlockSpec((block_rows, block_cols), lambda i, j: (i, j)),
            ],
            out_specs=pl.BlockSpec((1, 1, 1), lambda i, j: (i, 0, 0)),
            scratch_shapes=[pltpu.VMEM((block_rows, 1), jnp.float32)] * 4,
        ),
        compiler_params=pltpu.CompilerParams(
            dimension_semantics=("parallel", "arbitrary"),
            vmem_limit_bytes=32 << 20,   # v5e's scoped default is only 16 MiB
        ),
    )(x2, t2)

    # O(grid) final reduction; divide by the ORIGINAL row count.
    return (jnp.sum(partial_sums) / jnp.float32(n)).astype(x.dtype)


def _ref_loss(x, t):
    x32 = x.astype(jnp.float32)
    t32 = t.astype(jnp.float32)
    return jnp.mean(jnp.sum(-t32 * jax.nn.log_softmax(x32, axis=-1), axis=-1))


if __name__ == "__main__":
    key = jax.random.PRNGKey(0)
    k_x, k_t = jax.random.split(key)

    # 1) Small (batch, num_classes) case, f32.
    N, C = 16, 32
    x = jax.random.normal(k_x, (N, C), dtype=jnp.float32)
    target = jax.nn.softmax(
        jax.random.normal(k_t, (N, C), dtype=jnp.float32), axis=-1)
    loss = soft_target_cross_entropy(x, target)
    jax.block_until_ready(loss)
    assert jnp.allclose(loss, _ref_loss(x, target), rtol=1e-5, atol=1e-5), (
        loss, _ref_loss(x, target))

    # 2) Ragged batch (exercises the in-kernel row mask; no input padding).
    N2 = 13
    x_r = jax.random.normal(k_x, (N2, C), dtype=jnp.float32)
    t_r = jax.nn.softmax(
        jax.random.normal(k_t, (N2, C), dtype=jnp.float32), axis=-1)
    loss_r = soft_target_cross_entropy(x_r, t_r)
    jax.block_until_ready(loss_r)
    assert jnp.allclose(loss_r, _ref_loss(x_r, t_r), rtol=1e-5, atol=1e-5), (
        loss_r, _ref_loss(x_r, t_r))

    # 3) Force the class-tiled online-LSE path (partial class tile + row mask).
    N3, C3 = 13, 300
    x_w = jax.random.normal(k_x, (N3, C3), dtype=jnp.float32)
    t_w = jax.nn.softmax(
        jax.random.normal(k_t, (N3, C3), dtype=jnp.float32), axis=-1)
    loss_w = soft_target_cross_entropy(x_w, t_w, block_bytes=8192)
    jax.block_until_ready(loss_w)
    assert jnp.allclose(loss_w, _ref_loss(x_w, t_w), rtol=1e-5, atol=1e-5), (
        loss_w, _ref_loss(x_w, t_w))

    # 4) bf16 inputs (halves HBM traffic; math still runs in f32 in VMEM).
    x_b = x.astype(jnp.bfloat16)
    t_b = target.astype(jnp.bfloat16)
    loss_b = soft_target_cross_entropy(x_b, t_b)
    jax.block_until_ready(loss_b)
    assert jnp.allclose(loss_b.astype(jnp.float32), _ref_loss(x_b, t_b),
                        rtol=2e-2, atol=2e-2), (loss_b, _ref_loss(x_b, t_b))

    print("KERNEL_OK")
</pallas_src>

<mosaic_0001>
module attributes {stable_mosaic.version = 11 : i64} {
  func.func @kernel(%arg0: i32, %arg1: i32, %arg2: memref<8x32xf32, #tpu.memory_space<vmem>>, %arg3: memref<8x32xf32, #tpu.memory_space<vmem>>, %arg4: memref<1x1x1xf32, #tpu.memory_space<vmem>>, %arg5: memref<8x1xf32, #tpu.memory_space<vmem>>, %arg6: memref<8x1xf32, #tpu.memory_space<vmem>>, %arg7: memref<8x1xf32, #tpu.memory_space<vmem>>, %arg8: memref<8x1xf32, #tpu.memory_space<vmem>>) attributes {dimension_semantics = [#tpu.dimension_semantics<parallel>, #tpu.dimension_semantics<arbitrary>], iteration_bounds = array<i64: 2, 1>, scalar_prefetch = 0 : i64, scratch_operands = 4 : i64, tpu.core_type = #tpu.core_type<tc>, window_params = [{transform_indices = @transform_0, window_bounds = array<i64: 8, 32>}, {transform_indices = @transform_1, window_bounds = array<i64: 8, 32>}, {transform_indices = @transform_2, window_bounds = array<i64: 1, 1, 1>}]} {
    %c0_i32 = arith.constant 0 : i32
    %0 = arith.cmpi eq, %arg1, %c0_i32 : i32
    %1 = arith.extui %0 : i1 to i32
    %c0_i32_0 = arith.constant 0 : i32
    %2 = arith.cmpi ne, %1, %c0_i32_0 : i32
    scf.if %2 {
      %cst_25 = arith.constant 0xFF800000 : f32
      %35 = vector.broadcast %cst_25 : f32 to vector<8x1xf32>
      %c0_26 = arith.constant 0 : index
      %c0_27 = arith.constant 0 : index
      %36 = vector.load %arg5[%c0_26, %c0_27] : memref<8x1xf32, #tpu.memory_space<vmem>>, vector<8x1xf32>
      tpu.vector_store %arg5[%c0_26, %c0_27], %35 {strides = array<i32>} : memref<8x1xf32, #tpu.memory_space<vmem>>, vector<8x1xf32>,
      %cst_28 = arith.constant 0.000000e+00 : f32
      %37 = vector.broadcast %cst_28 : f32 to vector<8x1xf32>
      %c0_29 = arith.constant 0 : index
      %c0_30 = arith.constant 0 : index
      %38 = vector.load %arg6[%c0_29, %c0_30] : memref<8x1xf32, #tpu.memory_space<vmem>>, vector<8x1xf32>
      tpu.vector_store %arg6[%c0_29, %c0_30], %37 {strides = array<i32>} : memref<8x1xf32, #tpu.memory_space<vmem>>, vector<8x1xf32>,
      %cst_31 = arith.constant 0.000000e+00 : f32
      %39 = vector.broadcast %cst_31 : f32 to vector<8x1xf32>
      %c0_32 = arith.constant 0 : index
      %c0_33 = arith.constant 0 : index
      %40 = vector.load %arg7[%c0_32, %c0_33] : memref<8x1xf32, #tpu.memory_space<vmem>>, vector<8x1xf32>
      tpu.vector_store %arg7[%c0_32, %c0_33], %39 {strides = array<i32>} : memref<8x1xf32, #tpu.memory_space<vmem>>, vector<8x1xf32>,
      %cst_34 = arith.constant 0.000000e+00 : f32
      %41 = vector.broadcast %cst_34 : f32 to vector<8x1xf32>
      %c0_35 = arith.constant 0 : index
      %c0_36 = arith.constant 0 : index
      %42 = vector.load %arg8[%c0_35, %c0_36] : memref<8x1xf32, #tpu.memory_space<vmem>>, vector<8x1xf32>
      tpu.vector_store %arg8[%c0_35, %c0_36], %41 {strides = array<i32>} : memref<8x1xf32, #tpu.memory_space<vmem>>, vector<8x1xf32>,
    } else {
    }
    %c0 = arith.constant 0 : index
    %c0_1 = arith.constant 0 : index
    %3 = vector.load %arg2[%c0, %c0_1] : memref<8x32xf32, #tpu.memory_space<vmem>>, vector<8x32xf32>
    %c0_2 = arith.constant 0 : index
    %c0_3 = arith.constant 0 : index
    %4 = vector.load %arg3[%c0_2, %c0_3] : memref<8x32xf32, #tpu.memory_space<vmem>>, vector<8x32xf32>
    %c0_4 = arith.constant 0 : index
    %c0_5 = arith.constant 0 : index
    %5 = vector.load %arg5[%c0_4, %c0_5] : memref<8x1xf32, #tpu.memory_space<vmem>>, vector<8x1xf32>
    %cst = arith.constant dense<0xFF800000> : vector<8xf32>
    %6 = vector.multi_reduction <maximumf>, %3, %cst [1] : vector<8x32xf32> to vector<8xf32>
    %7 = vector.shape_cast %6 : vector<8xf32> to vector<8x1xf32>
    %8 = arith.maximumf %5, %7 : vector<8x1xf32>
    %9 = arith.subf %5, %8 : vector<8x1xf32>
    %10 = math.exp %9 : vector<8x1xf32>
    %c0_6 = arith.constant 0 : index
    %c0_7 = arith.constant 0 : index
    %11 = vector.load %arg6[%c0_6, %c0_7] : memref<8x1xf32, #tpu.memory_space<vmem>>, vector<8x1xf32>
    %12 = arith.mulf %10, %11 : vector<8x1xf32>
    %13 = vector.broadcast %8 : vector<8x1xf32> to vector<8x32xf32>
    %14 = arith.subf %3, %13 : vector<8x32xf32>
    %15 = math.exp %14 : vector<8x32xf32>
    %cst_8 = arith.constant dense<0.000000e+00> : vector<8xf32>
    %16 = vector.multi_reduction <add>, %15, %cst_8 [1] : vector<8x32xf32> to vector<8xf32>
    %17 = vector.shape_cast %16 : vector<8xf32> to vector<8x1xf32>
    %18 = arith.addf %12, %17 : vector<8x1xf32>
    %c0_9 = arith.constant 0 : index
    %c0_10 = arith.constant 0 : index
    %19 = vector.load %arg6[%c0_9, %c0_10] : memref<8x1xf32, #tpu.memory_space<vmem>>, vector<8x1xf32>
    tpu.vector_store %arg6[%c0_9, %c0_10], %18 {strides = array<i32>} : memref<8x1xf32, #tpu.memory_space<vmem>>, vector<8x1xf32>,
    %c0_11 = arith.constant 0 : index
    %c0_12 = arith.constant 0 : index
    %20 = vector.load %arg5[%c0_11, %c0_12] : memref<8x1xf32, #tpu.memory_space<vmem>>, vector<8x1xf32>
    tpu.vector_store %arg5[%c0_11, %c0_12], %8 {strides = array<i32>} : memref<8x1xf32, #tpu.memory_space<vmem>>, vector<8x1xf32>,
    %c0_13 = arith.constant 0 : index
    %c0_14 = arith.constant 0 : index
    %21 = vector.load %arg7[%c0_13, %c0_14] : memref<8x1xf32, #tpu.memory_space<vmem>>, vector<8x1xf32>
    %cst_15 = arith.constant dense<0.000000e+00> : vector<8xf32>
    %22 = vector.multi_reduction <add>, %4, %cst_15 [1] : vector<8x32xf32> to vector<8xf32>
    %23 = vector.shape_cast %22 : vector<8xf32> to vector<8x1xf32>
    %24 = arith.addf %21, %23 : vector<8x1xf32>
    %c0_16 = arith.constant 0 : index
    %c0_17 = arith.constant 0 : index
    %25 = vector.load %arg7[%c0_16, %c0_17] : memref<8x1xf32, #tpu.memory_space<vmem>>, vector<8x1xf32>
    tpu.vector_store %arg7[%c0_16, %c0_17], %24 {strides = array<i32>} : memref<8x1xf32, #tpu.memory_space<vmem>>, vector<8x1xf32>,
    %c0_18 = arith.constant 0 : index
    %c0_19 = arith.constant 0 : index
    %26 = vector.load %arg8[%c0_18, %c0_19] : memref<8x1xf32, #tpu.memory_space<vmem>>, vector<8x1xf32>
    %27 = arith.mulf %4, %3 : vector<8x32xf32>
    %cst_20 = arith.constant dense<0.000000e+00> : vector<8xf32>
    %28 = vector.multi_reduction <add>, %27, %cst_20 [1] : vector<8x32xf32> to vector<8xf32>
    %29 = vector.shape_cast %28 : vector<8xf32> to vector<8x1xf32>
    %30 = arith.addf %26, %29 : vector<8x1xf32>
    %c0_21 = arith.constant 0 : index
    %c0_22 = arith.constant 0 : index
    %31 = vector.load %arg8[%c0_21, %c0_22] : memref<8x1xf32, #tpu.memory_space<vmem>>, vector<8x1xf32>
    tpu.vector_store %arg8[%c0_21, %c0_22], %30 {strides = array<i32>} : memref<8x1xf32, #tpu.memory_space<vmem>>, vector<8x1xf32>,
    %c0_i32_23 = arith.constant 0 : i32
    %32 = arith.cmpi eq, %arg1, %c0_i32_23 : i32
    %33 = arith.extui %32 : i1 to i32
    %c0_i32_24 = arith.constant 0 : i32
    %34 = arith.cmpi ne, %33, %c0_i32_24 : i32
    scf.if %34 {
      %c0_25 = arith.constant 0 : index
      %c0_26 = arith.constant 0 : index
      %35 = vector.load %arg5[%c0_25, %c0_26] : memref<8x1xf32, #tpu.memory_space<vmem>>, vector<8x1xf32>
      %c0_27 = arith.constant 0 : index
      %c0_28 = arith.constant 0 : index
      %36 = vector.load %arg6[%c0_27, %c0_28] : memref<8x1xf32, #tpu.memory_space<vmem>>, vector<8x1xf32>
      %37 = math.log %36 : vector<8x1xf32>
      %38 = arith.addf %35, %37 : vector<8x1xf32>
      %c0_29 = arith.constant 0 : index
      %c0_30 = arith.constant 0 : index
      %39 = vector.load %arg7[%c0_29, %c0_30] : memref<8x1xf32, #tpu.memory_space<vmem>>, vector<8x1xf32>
      %40 = arith.mulf %38, %39 : vector<8x1xf32>
      %c0_31 = arith.constant 0 : index
      %c0_32 = arith.constant 0 : index
      %41 = vector.load %arg8[%c0_31, %c0_32] : memref<8x1xf32, #tpu.memory_space<vmem>>, vector<8x1xf32>
      %42 = arith.subf %40, %41 : vector<8x1xf32>
      %43 = vector.shape_cast %42 : vector<8x1xf32> to vector<1x8x1xf32>
      %cst_33 = arith.constant dense<0.000000e+00> : vector<1xf32>
      %44 = vector.multi_reduction <add>, %43, %cst_33 [1, 2] : vector<1x8x1xf32> to vector<1xf32>
      %45 = vector.shape_cast %44 : vector<1xf32> to vector<1x1x1xf32>
      %46 = vector.extract %45[0, 0, 0] : f32 from vector<1x1x1xf32>
      %47 = vector.broadcast %46 : f32 to vector<1x1x1xf32>
      %c0_34 = arith.constant 0 : index
      %c0_35 = arith.constant 0 : index
      %c0_36 = arith.constant 0 : index
      %48 = vector.load %arg4[%c0_34, %c0_35, %c0_36] : memref<1x1x1xf32, #tpu.memory_space<vmem>>, vector<1x1x1xf32>
      tpu.vector_store %arg4[%c0_34, %c0_35, %c0_36], %47 {strides = array<i32>} : memref<1x1x1xf32, #tpu.memory_space<vmem>>, vector<1x1x1xf32>,
    } else {
    }
    return
  }
  func.func @transform_0(%arg0: i32, %arg1: i32) -> (i32, i32) {
    %c0_i32 = arith.constant 0 : i32
    return %arg0, %arg1 : i32, i32
  }
  func.func @transform_1(%arg0: i32, %arg1: i32) -> (i32, i32) {
    %c0_i32 = arith.constant 0 : i32
    return %arg0, %arg1 : i32, i32
  }
  func.func @transform_2(%arg0: i32, %arg1: i32) -> (i32, i32, i32) {
    %c0_i32 = arith.constant 0 : i32
    %c0_i32_0 = arith.constant 0 : i32
    %c0_i32_1 = arith.constant 0 : i32
    return %arg0, %c0_i32, %c0_i32_0 : i32, i32, i32
  }
}

</mosaic_0001>

<llo_original>
// kernel: tpu_custom_call.1
$region0: #{tpu_custom_call.1}
  #allocation0 [shape = 'u32[]', space=smem, size = 0x4, offset = 0x4, fixed_abs, tag = 'smem constant byte address 0x4 - core index']
  #allocation1 [shape = 'u32[144,128]{1,0:T(1,128)}', space=vmem, size = 0x12000, scoped, tag = 'internal scratch']
  #allocation2 [shape = 'f32[8,1]{1,0:T(8,128)}', space=vmem, size = 0x1000, scoped, tag = 'scratch operand']
  #allocation3 [shape = 'f32[8,1]{1,0:T(8,128)}', space=vmem, size = 0x1000, scoped, tag = 'scratch operand']
  #allocation4 [shape = 'f32[8,1]{1,0:T(8,128)}', space=vmem, size = 0x1000, scoped, tag = 'scratch operand']
  #allocation5 [shape = 'f32[8,1]{1,0:T(8,128)}', space=vmem, size = 0x1000, scoped, tag = 'scratch operand']
  %s0 = inlined_call_operand.hbm [shape: f32[16,32], index: 0, kind: input, shape index: {}]
  %s1 = inlined_call_operand.hbm [shape: f32[16,32], index: 1, kind: input, shape index: {}]
  %s2 = inlined_call_operand.vmem [shape: f32[2,1,1], index: 2, kind: output, shape index: {}]
  %s3 = sld [smem:[#allocation0]]
  $region57: #{tpu_custom_call.1} parent=0
    _
  %s5 = ssub.s32 1, %s3
  %s6 = scalar_select 0, %s5, %s3
  $region1: #{tpu_custom_call.1} parent=0
    #allocation6 [shape = 'u8[8192]{0}', space=vmem, size = 0x2000, scoped, tag = 'input window, operand 0']
    #allocation7 [shape = 's32[2]{0}', space=sflag, size = 0x8, scoped, tag = 'scoped memory for tpu_custom_call.1']
    #allocation8 [shape = 'u8[8192]{0}', space=vmem, size = 0x2000, scoped, tag = 'input window, operand 1']
    #allocation9 [shape = 's32[2]{0}', space=sflag, size = 0x8, scoped, tag = 'scoped memory for tpu_custom_call.1']
    %7 = vsyncpa [#allocation7], 0
    %s8 = scalar_lea.sflag [#allocation7], 1
    %9 = vsyncpa %s8, 0
    %10 = vsyncpa [#allocation9], 0
    %s11 = scalar_lea.sflag [#allocation9], 1
    %12 = vsyncpa %s11, 0
    loop: start=0, step=1, limit=4
    $region2: #{tpu_custom_call.1} parent=1 // loop_pre_header
      _
    $region3: #{tpu_custom_call.1} parent=1 // loop_header
      %s14 = sphi 0, %s18
      %p15 = scmp.ge.s32.totalorder %s14, 4
      %s21 = sphi 0, %s33
      %s22 = sphi 0, %s29
      %s23 = sphi 0, %s21
      %s24 = sphi 0, %s22
      %s25 = sphi 0, %s23
      %s26 = sphi 0, %s24
      %s38 = sphi 0, %s40
      %s41 = sphi 0, %s38
      %s42 = sphi 0, %s41
      %s58 = sphi 0, %s42
      %s66 = sphi 0, %s68
      %s69 = sphi 0, %s66
      %s70 = sphi 0, %s69
      %s86 = sphi 0, %s70
      %s92 = sphi 0, %s94
      %s95 = sphi 0, %s92
      %s96 = sphi 0, %s95
      %s112 = sphi 0, %s96
    $region4: #{tpu_custom_call.1} parent=1 // loop_header_branch
      %17 = sbr.rel (%p15) target = $region8
    $region5: #{tpu_custom_call.1} parent=1 // loop_body
      %s19 = ssub.s32 %s14, 1
      %s20 = ssub.s32 %s14, 2
      %s27 = sadd.s32 1, %s22
      %p28 = scmp.ge.s32.totalorder %s27, 1
      %s29 = scalar_select %p28, 0, %s27
      %s30 = sadd.s32 1, %s21
      %s31 = scalar_select %p28, %s30, %s21
      %p32 = scmp.ge.s32.totalorder %s31, 2
      %s33 = scalar_select %p32, 0, %s31
      %s34 = ssub.s32 %s21, %s33
      %s35 = ssub.s32 %s22, %s29
      %s36 = sor.u32 %s34, %s35
      %p37 = scmp.eq.s32.totalorder %s36, 0
      %s39 = sadd.s32 %s38, 1
      %s40 = scalar_select %p37, %s38, %s39
      %p43 = pneg %p37
      %p44 = scmp.eq.s32.totalorder %s14, 1
      %p45 = por %p43, %p44
      %p46 = scmp.ne.s32.totalorder %s38, %s41
      %p47 = scmp.eq.s32.totalorder %s14, 0
      %p48 = por %p46, %p47
      %p49 = scmp.ne.s32.totalorder %s38, %s41
      %p50 = scmp.eq.s32.totalorder %s19, 1
      %p51 = por %p49, %p50
      %p52 = scmp.ne.s32.totalorder %s41, %s42
      %p53 = scmp.eq.s32.totalorder %s19, 0
      %p54 = por %p52, %p53
      %p55 = scmp.ne.s32.totalorder %s41, %s42
      %p56 = scmp.eq.s32.totalorder %s20, 1
      %p57 = por %p55, %p56
      %p59 = scmp.ne.s32.totalorder %s42, %s58
      %p60 = scmp.eq.s32.totalorder %s20, 0
      %p61 = por %p59, %p60
      %s62 = ssub.s32 %s21, %s33
      %s63 = ssub.s32 %s22, %s29
      %s64 = sor.u32 %s62, %s63
      %p65 = scmp.eq.s32.totalorder %s64, 0
      %s67 = sadd.s32 %s66, 1
      %s68 = scalar_select %p65, %s66, %s67
      %p71 = pneg %p65
      %p72 = scmp.eq.s32.totalorder %s14, 1
      %p73 = por %p71, %p72
      %p74 = scmp.ne.s32.totalorder %s66, %s69
      %p75 = scmp.eq.s32.totalorder %s14, 0
      %p76 = por %p74, %p75
      %p77 = scmp.ne.s32.totalorder %s66, %s69
      %p78 = scmp.eq.s32.totalorder %s19, 1
      %p79 = por %p77, %p78
      %p80 = scmp.ne.s32.totalorder %s69, %s70
      %p81 = scmp.eq.s32.totalorder %s19, 0
      %p82 = por %p80, %p81
      %p83 = scmp.ne.s32.totalorder %s69, %s70
      %p84 = scmp.eq.s32.totalorder %s20, 1
      %p85 = por %p83, %p84
      %p87 = scmp.ne.s32.totalorder %s70, %s86
      %p88 = scmp.eq.s32.totalorder %s20, 0
      %p89 = por %p87, %p88
      %s90 = ssub.s32 %s21, %s33
      %p91 = scmp.eq.s32.totalorder %s90, 0
      %s93 = sadd.s32 %s92, 1
      %s94 = scalar_select %p91, %s92, %s93
      %p97 = pneg %p91
      %p98 = scmp.eq.s32.totalorder %s14, 1
      %p99 = por %p97, %p98
      %p100 = scmp.ne.s32.totalorder %s92, %s95
      %p101 = scmp.eq.s32.totalorder %s14, 0
      %p102 = por %p100, %p101
      %p103 = scmp.ne.s32.totalorder %s92, %s95
      %p104 = scmp.eq.s32.totalorder %s19, 1
      %p105 = por %p103, %p104
      %p106 = scmp.ne.s32.totalorder %s95, %s96
      %p107 = scmp.eq.s32.totalorder %s19, 0
      %p108 = por %p106, %p107
      %p109 = scmp.ne.s32.totalorder %s95, %s96
      %p110 = scmp.eq.s32.totalorder %s20, 1
      %p111 = por %p109, %p110
      %p113 = scmp.ne.s32.totalorder %s96, %s112
      %p114 = scmp.eq.s32.totalorder %s20, 0
      %p115 = por %p113, %p114
      %p116 = scmp.le.s32.totalorder 1, %s14
      %p117 = scmp.lt.s32.totalorder %s14, 3
      %p118 = pnand %p116, %p117
      %p119 = pneg %p118
      // Predicated region
      $region9: #{tpu_custom_call.1} parent=5 // pred_check
        _
      $region10: #{tpu_custom_call.1} parent=5 // pred_check_branch
        %121 = sbr.rel (%p118) target = $region12
      $region11: #{tpu_custom_call.1} parent=5 // pred_region
        %s122 = ssub.s32 %s14, 1
      $region12: #{tpu_custom_call.1} parent=5 // pred_fallthru
        _
      %p123 = scmp.lt.s32.totalorder %s14, 2
      // Predicated region
      $region13: #{tpu_custom_call.1} parent=5 // pred_check
        %p124 = pneg %p123
      $region14: #{tpu_custom_call.1} parent=5 // pred_check_branch
        %126 = sbr.rel (%p124) target = $region16
      $region15: #{tpu_custom_call.1} parent=5 // pred_region
        // Predicated region
        $region17: #{tpu_custom_call.1} parent=15 // pred_check
          %p127 = pneg %p48
        $region18: #{tpu_custom_call.1} parent=15 // pred_check_branch
          %129 = sbr.rel (%p127) target = $region20
        $region19: #{tpu_custom_call.1} parent=15 // pred_region
          %s130 = sand.u32 %s38, 1
          %s131 = scalar_lea.sflag [#allocation7], %s130
          %s132 = sand.u32 %s38, 1
          %s133 = smul.addr %s132, 8
          %s134 = scalar_lea.vmem [#allocation6], %s133
          %s136 = ssub.s32 128, 128
          %137 = vsyncadd %s131, %s136
          %s138 = sadd.s32 %s22, %s21
          %s139 = smul.addr %s138, 128
          %s140 = scalar_lea.hbm %s0, %s139
          %s142 = sshll.u32 %s134, 4
          %s143 = int_to_ptr.vmem [resolvable:$true] %s142
          %145 = dma.hbm_to_vmem [thread:$0]  %s140, 128, %s143, %s131
        $region20: #{tpu_custom_call.1} parent=15 // pred_fallthru
          _
        // Predicated region
        $region21: #{tpu_custom_call.1} parent=15 // pred_check
          %p146 = pneg %p76
        $region22: #{tpu_custom_call.1} parent=15 // pred_check_branch
          %148 = sbr.rel (%p146) target = $region24
        $region23: #{tpu_custom_call.1} parent=15 // pred_region
          %s149 = sand.u32 %s66, 1
          %s150 = scalar_lea.sflag [#allocation9], %s149
          %s151 = sand.u32 %s66, 1
          %s152 = smul.addr %s151, 8
          %s153 = scalar_lea.vmem [#allocation8], %s152
          %s155 = ssub.s32 128, 128
          %156 = vsyncadd %s150, %s155
          %s157 = sadd.s32 %s22, %s21
          %s158 = smul.addr %s157, 128
          %s159 = scalar_lea.hbm %s1, %s158
          %s161 = sshll.u32 %s153, 4
          %s162 = int_to_ptr.vmem [resolvable:$true] %s161
          %164 = dma.hbm_to_vmem [thread:$0]  %s159, 128, %s162, %s150
        $region24: #{tpu_custom_call.1} parent=15 // pred_fallthru
          _
      $region16: #{tpu_custom_call.1} parent=5 // pred_fallthru
        _
      %p165 = scmp.le.s32.totalorder 1, %s14
      %p166 = scmp.lt.s32.totalorder %s14, 3
      %p167 = pnand %p165, %p166
      %p168 = pneg %p167
      // Predicated region
      $region25: #{tpu_custom_call.1} parent=5 // pred_check
        _
      $region26: #{tpu_custom_call.1} parent=5 // pred_check_branch
        %170 = sbr.rel (%p167) target = $region28
      $region27: #{tpu_custom_call.1} parent=5 // pred_region
        %s171 = ssub.s32 %s14, 1
        %s172 = sand.u32 %s41, 1
        %s173 = scalar_lea.sflag [#allocation7], %s172
        %s174 = sand.u32 %s41, 1
        %s175 = smul.addr %s174, 8
        %s176 = scalar_lea.vmem [#allocation6], %s175
        // Predicated region
        $region29: #{tpu_custom_call.1} parent=27 // pred_check
          %p177 = pneg %p54
        $region30: #{tpu_custom_call.1} parent=27 // pred_check_branch
          %179 = sbr.rel (%p177) target = $region32
        $region31: #{tpu_custom_call.1} parent=27 // pred_region
          %180 = dma.done %s173, 128
        $region32: #{tpu_custom_call.1} parent=27 // pred_fallthru
          _
        %s181 = sand.u32 %s69, 1
        %s182 = scalar_lea.sflag [#allocation9], %s181
        %s183 = sand.u32 %s69, 1
        %s184 = smul.addr %s183, 8
        %s185 = scalar_lea.vmem [#allocation8], %s184
        // Predicated region
        $region33: #{tpu_custom_call.1} parent=27 // pred_check
          %p186 = pneg %p82
        $region34: #{tpu_custom_call.1} parent=27 // pred_check_branch
          %188 = sbr.rel (%p186) target = $region36
        $region35: #{tpu_custom_call.1} parent=27 // pred_region
          %189 = dma.done %s182, 128
        $region36: #{tpu_custom_call.1} parent=27 // pred_fallthru
          _
        %s190 = sand.u32 %s41, 1
        %s191 = scalar_lea.sflag [#allocation7], %s190
        %s192 = sand.u32 %s41, 1
        %s193 = smul.addr %s192, 8
        %s194 = scalar_lea.vmem [#allocation6], %s193
        %p195 = pneg %p54
        %p196 = pneg %p51
        %s197 = sand.u32 %s69, 1
        %s198 = scalar_lea.sflag [#allocation9], %s197
        %s199 = sand.u32 %s69, 1
        %s200 = smul.addr %s199, 8
        %s201 = scalar_lea.vmem [#allocation8], %s200
        %p202 = pneg %p82
        %p203 = pneg %p79
        %p204 = pneg %p108
        %p205 = pneg %p105
        %p206 = scmp.lt.s32.totalorder %s23, 1
        %s207 = scalar_select %p206, %s23, 1
        %s208 = scalar_lea.vmem %s2, %s207
        %p209 = scmp.lt.s32.totalorder %s23, 1
        %s210 = scalar_select %p209, %s23, 1
        %s211 = scalar_lea.vmem %s2, %s210
        %p212 = scmp.eq.s32.totalorder %s24, 0
        // Predicated region
        $region37: #{tpu_custom_call.1} parent=27 // pred_check
          %p213 = pneg %p212
        $region38: #{tpu_custom_call.1} parent=27 // pred_check_branch
          %215 = sbr.rel (%p213) target = $region40
        $region39: #{tpu_custom_call.1} parent=27 // pred_region
          %vm216 = vcmask 7168
          %217 = vst.msk [vmem:[#allocation2] sm:$0xff] %vm216, -inf
          %218 = vst.msk [vmem:[#allocation3] sm:$0xff] %vm216, 0.0
          %219 = vst.msk [vmem:[#allocation4] sm:$0xff] %vm216, 0.0
          %220 = vst.msk [vmem:[#allocation5] sm:$0xff] %vm216, 0.0
        $region40: #{tpu_custom_call.1} parent=27 // pred_fallthru
          _
        %v221 = vld [vmem:[%s176] sm:$0xff]
        %v222 = vld [vmem:[%s185] sm:$0xff]
        %v223 = vld [vmem:[#allocation2] sm:$0xff]
        %vm224 = vcmask 261120
        %v225 = vsel %vm224, %v221, -inf
        %226 = vmax.xlane.f32.xlu0 %v225
        %v227 = vpop.xlane.xlu0 %226
        %v228 = vmax.f32 %v223, %v227
        %v229 = vsub.f32 %v223, %v228
        %v230 = vmul.f32 %v229, 1.442695
        %v231 = vpow.pop %v230
        %v232 = vld [vmem:[#allocation3] sm:$0xff]
        %v233 = vmul.f32 %v231, %v232
        %235 = vset.pattern.permute.xlu0 0
        %236 = vperm.xlu0 %235, %v228
        %v237 = vpop.permute.xlu0 %236
        %v239 = vsub.f32 %v221, %v237
        %v240 = vmul.f32 %v239, 1.442695
        %v241 = vpow.pop %v240
        %v242 = vsel %vm224, %v241, 0.0
        %243 = vadd.xlane.f32.xlu0 %v242
        %v244 = vpop.xlane.xlu0 %243
        %v245 = vadd.f32 %v233, %v244
        %vm246 = vcmask 7168
        %247 = vst.msk [vmem:[#allocation3] sm:$0xff] %vm246, %v245
        %248 = vst.msk [vmem:[#allocation2] sm:$0xff] %vm246, %v228
        %v249 = vld [vmem:[#allocation4] sm:$0xff]
        %v250 = vsel %vm224, %v222, 0.0
        %251 = vadd.xlane.f32.xlu0 %v250
        %v252 = vpop.xlane.xlu0 %251
        %v253 = vadd.f32 %v249, %v252
        %254 = vst.msk [vmem:[#allocation4] sm:$0xff] %vm246, %v253
        %v255 = vld [vmem:[#allocation5] sm:$0xff]
        %v256 = vmul.f32 %v222, %v221
        %v257 = vsel %vm224, %v256, 0.0
        %258 = vadd.xlane.f32.xlu0 %v257
        %v259 = vpop.xlane.xlu0 %258
        %v260 = vadd.f32 %v255, %v259
        %261 = vst.msk [vmem:[#allocation5] sm:$0xff] %vm246, %v260
        // Predicated region
        $region41: #{tpu_custom_call.1} parent=27 // pred_check
          %p262 = pneg %p212
        $region42: #{tpu_custom_call.1} parent=27 // pred_check_branch
          %264 = sbr.rel (%p262) target = $region44
        $region43: #{tpu_custom_call.1} parent=27 // pred_region
          %v265 = vld [vmem:[#allocation2] sm:$0xff]
          %v266 = vld [vmem:[#allocation3] sm:$0xff]
          %v267 = vlog2.pop %v266
          %v268 = vmul.f32 %v267, 0.6931472
          %v269 = vadd.f32 %v265, %v268
          %v270 = vld [vmem:[#allocation4] sm:$0xff]
          %v271 = vmul.f32 %v269, %v270
          %v272 = vld [vmem:[#allocation5] sm:$0xff]
          %v273 = vsub.f32 %v271, %v272
          %v274 = vsel %vm246, %v273, 0.0
          %275 = vadd.xlane.f32.xlu0 %v274
          %v276 = vpop.xlane.xlu0 %275
          %v277 = vrot.slane %v276, 4
          %v278 = vadd.f32 %v276, %v277
          %v279 = vrot.slane %v278, 2
          %v280 = vadd.f32 %v278, %v279
          %v281 = vrot.slane %v280, 1
          %v282 = vadd.f32 %v280, %v281
          %s283 = vtos %v282
          %v284 = vstv %s283
          %vm285 = vcmask 0
          %286 = vst.msk [vmem:[%s211] sm:$0x1] %vm285, %v284
        $region44: #{tpu_custom_call.1} parent=27 // pred_fallthru
          _
        %p287 = scmp.lt.s32.totalorder %s23, 1
        %s288 = scalar_select %p287, %s23, 1
        %s289 = scalar_lea.vmem %s2, %s288
        // Predicated region
        $region45: #{tpu_custom_call.1} parent=27 // pred_check
          %p290 = pneg %p105
        $region46: #{tpu_custom_call.1} parent=27 // pred_check_branch
          %292 = sbr.rel (%p290) target = $region48
        $region47: #{tpu_custom_call.1} parent=27 // pred_region
          _
        $region48: #{tpu_custom_call.1} parent=27 // pred_fallthru
          _
      $region28: #{tpu_custom_call.1} parent=5 // pred_fallthru
        _
      %p293 = scmp.le.s32.totalorder 2, %s14
      // Predicated region
      $region49: #{tpu_custom_call.1} parent=5 // pred_check
        %p294 = pneg %p293
      $region50: #{tpu_custom_call.1} parent=5 // pred_check_branch
        %296 = sbr.rel (%p294) target = $region52
      $region51: #{tpu_custom_call.1} parent=5 // pred_region
        %s297 = ssub.s32 %s14, 2
        // Predicated region
        $region53: #{tpu_custom_call.1} parent=51 // pred_check
          %p298 = pneg %p111
        $region54: #{tpu_custom_call.1} parent=51 // pred_check_branch
          %300 = sbr.rel (%p298) target = $region56
        $region55: #{tpu_custom_call.1} parent=51 // pred_region
          %p301 = scmp.lt.s32.totalorder %s25, 1
          %s302 = scalar_select %p301, %s25, 1
          %s303 = scalar_lea.vmem %s2, %s302
        $region56: #{tpu_custom_call.1} parent=51 // pred_fallthru
          _
      $region52: #{tpu_custom_call.1} parent=5 // pred_fallthru
        _
    $region6: #{tpu_custom_call.1} parent=1 // loop_footer
      %s18 = sadd.s32 1, %s14
    $region7: #{tpu_custom_call.1} parent=1 // loop_footer_branch
      %13 = sbr.rel target = $region3
    $region8: #{tpu_custom_call.1} parent=1 // loop_exit
      _
    %304 = vsyncpa [#allocation7], 1
    %s305 = scalar_lea.sflag [#allocation7], 1
    %306 = vsyncpa %s305, 1
    %307 = vsyncpa [#allocation9], 1
    %s308 = scalar_lea.sflag [#allocation9], 1
    %309 = vsyncpa %s308, 1

</llo_original>
